<compile_context>
chip_gen: v7x
topology: tpu7x:2x2x1
jax: 0.10.0
libtpu: 0.0.40
codegen_flags: <defaults>
</compile_context>

<pallas_src>
import jax
import jax.numpy as jnp
from jax import lax
from jax.experimental import pallas as pl
from jax.experimental.pallas import tpu as pltpu


_TARGET_BLOCK_ELEMS = 512 * 1024      # ~2 MiB per f32 input block
_LANE_CANDIDATES = (512, 256, 128)    # lane-dense last dim (multiple of 128)


def _round_up(n: int, m: int) -> int:
    return ((n + m - 1) // m) * m


def _num_splits() -> int:
    """2-way split only on 2-TensorCore chips (v7x); 1 elsewhere."""
    try:
        kind = jax.devices()[0].device_kind.lower()
    except Exception:
        return 1
    return 2 if ("v7" in kind or "7x" in kind) else 1


def _make_dice_kernel(rows: int, tm: int, lanes: int, steps: int, need_mask: bool):
    n_chunks = tm // 8

    def kernel(x_ref, t_ref, inter_ref, card_ref, acc_i_ref, acc_c_ref):
        c = pl.program_id(0)   # split (megacore) axis
        k = pl.program_id(1)   # reduction axis

        # Start of this split's reduction pass -> zero the vreg-shaped accumulators.
        @pl.when(k == 0)
        def _():
            acc_i_ref[...] = jnp.zeros_like(acc_i_ref)
            acc_c_ref[...] = jnp.zeros_like(acc_c_ref)

        # Intended global first-row of this block (from grid indices, NOT from
        # where the clamped DMA actually read) -> duplicated / out-of-range
        # rows mask to exactly zero contribution.
        row0 = (c * steps + k) * tm

        def fold(i, carry):
            acc_i, acc_c = carry
            r = pl.multiple_of(i * 8, 8)
            x = x_ref[pl.ds(r, 8), :]
            t = t_ref[pl.ds(r, 8), :].astype(jnp.float32)
            xb = (x > 0.5).astype(jnp.float32)   # matches (input > 0.5).float()
            if need_mask:
                rid = row0 + r + lax.broadcasted_iota(jnp.int32, (8, 1), 0)
                valid = rid < rows
                xb = jnp.where(valid, xb, 0.0)
                t = jnp.where(valid, t, 0.0)
            return acc_i + xb * t, acc_c + (xb + t)

        zeros = jnp.zeros((8, lanes), jnp.float32)
        acc_i, acc_c = lax.fori_loop(
            0, n_chunks, fold, (zeros, zeros), unroll=min(4, n_chunks))
        acc_i_ref[...] += acc_i
        acc_c_ref[...] += acc_c

        # Last step of this split: collapse accumulators to the scalar partials
        # (the only cross-lane/sublane reduction in the whole pass).
        @pl.when(k == steps - 1)
        def _():
            inter_ref[...] = jnp.sum(acc_i_ref[...]).reshape(1, 1, 1)
            card_ref[...] = jnp.sum(acc_c_ref[...]).reshape(1, 1, 1)

    return kernel


def dice_loss_thresholded(x: jax.Array, target: jax.Array, eps: float = 1e-6,
                          *, bf16_inputs: bool = False) -> jax.Array:
    assert x.shape == target.shape
    # Keep native floating dtypes; only lift non-floats.
    if not jnp.issubdtype(x.dtype, jnp.floating):
        x = x.astype(jnp.float32)
    if not jnp.issubdtype(target.dtype, jnp.floating):
        target = target.astype(jnp.float32)
    if bf16_inputs:
        # Opt-in: halves HBM bytes on this HBM-bound op. Only numerics risk is
        # x values within ~2^-9 of the 0.5 threshold flipping.
        x = x.astype(jnp.bfloat16)
        target = target.astype(jnp.bfloat16)

    total = int(x.size)
    lanes = None
    for cand in _LANE_CANDIDATES:
        if total % cand == 0:
            lanes = cand
            break
    if lanes is None:
        lanes = 128

    x_flat = x.reshape(-1)
    t_flat = target.reshape(-1)
    padded = _round_up(total, lanes)
    if padded != total:
        # TODO(synk): rare ragged case (total not a multiple of 128): this pad
        # still materializes a copy; all other tail/alignment handling is done
        # in-kernel via row masking. Zero padding is neutral for both sums.
        x_flat = jnp.pad(x_flat, (0, padded - total))
        t_flat = jnp.pad(t_flat, (0, padded - total))
    rows = padded // lanes
    x2 = x_flat.reshape(rows, lanes)   # free bitcast when no pad happened
    t2 = t_flat.reshape(rows, lanes)

    # Row tile: ~2 MiB f32 per input block, sublane-aligned.
    max_tm = max(8, _TARGET_BLOCK_ELEMS // lanes)
    tm = min(max_tm, _round_up(rows, 8))
    nblk = -(-rows // tm)                 # number of row blocks (ceil div)
    splits = _num_splits()
    if nblk < 2:
        splits = 1
    steps = -(-nblk // splits)
    # Mask needed iff the grid "covers" more rows than actually exist.
    need_mask = (splits * steps * tm != rows)

    # Clamp the block index so no grid point requests a fully out-of-range
    # block; clamped (duplicate) blocks are zeroed by the in-kernel row mask.
    in_map = lambda c, k: (jnp.minimum(c * steps + k, nblk - 1), 0)
    out_map = lambda c, k: (c, 0, 0)

    kernel = _make_dice_kernel(rows, tm, lanes, steps, need_mask)

    inter, card = pl.pallas_call(
        kernel,
        out_shape=(
            jax.ShapeDtypeStruct((splits, 1, 1), jnp.float32),
            jax.ShapeDtypeStruct((splits, 1, 1), jnp.float32),
        ),
        grid_spec=pltpu.PrefetchScalarGridSpec(
            num_scalar_prefetch=0,
            grid=(splits, steps),
            in_specs=[
                pl.BlockSpec((tm, lanes), in_map),
                pl.BlockSpec((tm, lanes), in_map),
            ],
            out_specs=[
                pl.BlockSpec((1, 1, 1), out_map),
                pl.BlockSpec((1, 1, 1), out_map),
            ],
            scratch_shapes=[
                pltpu.VMEM((8, lanes), jnp.float32),
                pltpu.VMEM((8, lanes), jnp.float32),
            ],
        ),
        compiler_params=pltpu.CompilerParams(
            dimension_semantics=("parallel", "arbitrary"),
        ),
    )(x2, t2)

    inter_s = jnp.sum(inter)
    card_s = jnp.sum(card)
    dice = 2.0 * inter_s / (card_s + eps)
    # torch.mean over a 0-d tensor is the value itself.
    return jnp.mean(1.0 - dice)


def _reference(x, target, eps=1e-6):
    xb = (x > 0.5).astype(jnp.float32)
    inter = jnp.sum(xb * target.astype(jnp.float32))
    card = jnp.sum(xb + target.astype(jnp.float32))
    return jnp.mean(1.0 - 2.0 * inter / (card + eps))


if __name__ == "__main__":
    key = jax.random.PRNGKey(0)
    k1, k2 = jax.random.split(key)
    B, C, H, W = 2, 4, 16, 16
    x = jax.random.uniform(k1, (B, C, H, W), dtype=jnp.float32)                 # "scores"
    target = (jax.random.uniform(k2, (B, C, H, W)) > 0.5).astype(jnp.float32)   # one-hot-ish labels

    loss = jax.block_until_ready(dice_loss_thresholded(x, target))
    ref = jax.block_until_ready(_reference(x, target))
    assert jnp.allclose(loss, ref, atol=1e-5, rtol=1e-5), (loss, ref)

    # Also exercise a ragged-row shape (rows not a multiple of the row tile).
    x3 = jax.random.uniform(k1, (3, 5, 16, 16), dtype=jnp.float32)
    t3 = (jax.random.uniform(k2, (3, 5, 16, 16)) > 0.5).astype(jnp.float32)
    loss3 = jax.block_until_ready(dice_loss_thresholded(x3, t3))
    ref3 = jax.block_until_ready(_reference(x3, t3))
    assert jnp.allclose(loss3, ref3, atol=1e-5, rtol=1e-5), (loss3, ref3)

    print("KERNEL_OK")
</pallas_src>

<mosaic_0001>
module attributes {stable_mosaic.version = 11 : i64} {
  func.func @kernel(%arg0: i32, %arg1: i32, %arg2: memref<8x512xf32, #tpu.memory_space<vmem>>, %arg3: memref<8x512xf32, #tpu.memory_space<vmem>>, %arg4: memref<1x1x1xf32, #tpu.memory_space<vmem>>, %arg5: memref<1x1x1xf32, #tpu.memory_space<vmem>>, %arg6: memref<8x512xf32, #tpu.memory_space<vmem>>, %arg7: memref<8x512xf32, #tpu.memory_space<vmem>>) attributes {dimension_semantics = [#tpu.dimension_semantics<parallel>, #tpu.dimension_semantics<arbitrary>], iteration_bounds = array<i64: 1, 1>, scalar_prefetch = 0 : i64, scratch_operands = 2 : i64, tpu.core_type = #tpu.core_type<tc>, window_params = [{transform_indices = @transform_0, window_bounds = array<i64: 8, 512>}, {transform_indices = @transform_1, window_bounds = array<i64: 8, 512>}, {transform_indices = @transform_2, window_bounds = array<i64: 1, 1, 1>}, {transform_indices = @transform_3, window_bounds = array<i64: 1, 1, 1>}]} {
    %c0_i32 = arith.constant 0 : i32
    %0 = arith.cmpi eq, %arg1, %c0_i32 : i32
    %1 = arith.extui %0 : i1 to i32
    %c0_i32_0 = arith.constant 0 : i32
    %2 = arith.cmpi ne, %1, %c0_i32_0 : i32
    scf.if %2 {
      %cst_18 = arith.constant 0.000000e+00 : f32
      %44 = vector.broadcast %cst_18 : f32 to vector<8x512xf32>
      %c0_19 = arith.constant 0 : index
      %c0_20 = arith.constant 0 : index
      %45 = vector.load %arg6[%c0_19, %c0_20] : memref<8x512xf32, #tpu.memory_space<vmem>>, vector<8x512xf32>
      tpu.vector_store %arg6[%c0_19, %c0_20], %44 {strides = array<i32>} : memref<8x512xf32, #tpu.memory_space<vmem>>, vector<8x512xf32>,
      %cst_21 = arith.constant 0.000000e+00 : f32
      %46 = vector.broadcast %cst_21 : f32 to vector<8x512xf32>
      %c0_22 = arith.constant 0 : index
      %c0_23 = arith.constant 0 : index
      %47 = vector.load %arg7[%c0_22, %c0_23] : memref<8x512xf32, #tpu.memory_space<vmem>>, vector<8x512xf32>
      tpu.vector_store %arg7[%c0_22, %c0_23], %46 {strides = array<i32>} : memref<8x512xf32, #tpu.memory_space<vmem>>, vector<8x512xf32>,
    } else {
    }
    %c1_i32 = arith.constant 1 : i32
    %3 = arith.muli %arg0, %c1_i32 : i32
    %4 = arith.addi %3, %arg1 : i32
    %c8_i32 = arith.constant 8 : i32
    %5 = arith.muli %4, %c8_i32 : i32
    %cst = arith.constant 0.000000e+00 : f32
    %6 = vector.broadcast %cst : f32 to vector<8x512xf32>
    %c0_i32_1 = arith.constant 0 : i32
    %c8_i32_2 = arith.constant 8 : i32
    %7 = arith.muli %c0_i32_1, %c8_i32_2 : i32
    %8 = tpu.assume_multiple %7, 8 : i32
    %9 = arith.index_cast %8 : i32 to index
    %c0 = arith.constant 0 : index
    %10 = vector.load %arg2[%9, %c0] : memref<8x512xf32, #tpu.memory_space<vmem>>, vector<8x512xf32>
    %11 = arith.index_cast %8 : i32 to index
    %c0_3 = arith.constant 0 : index
    %12 = vector.load %arg3[%11, %c0_3] : memref<8x512xf32, #tpu.memory_space<vmem>>, vector<8x512xf32>
    %cst_4 = arith.constant 5.000000e-01 : f32
    %13 = vector.broadcast %cst_4 : f32 to vector<8x512xf32>
    %14 = arith.cmpf ogt, %10, %13 : vector<8x512xf32>
    %15 = arith.extui %14 : vector<8x512xi1> to vector<8x512xi32>
    %16 = arith.sitofp %15 : vector<8x512xi32> to vector<8x512xf32>
    %17 = arith.addi %5, %8 : i32
    %18 = tpu.iota {dimensions = array<i32: 0>} : vector<8x1xi32>
    %19 = vector.broadcast %17 : i32 to vector<8x1xi32>
    %20 = arith.addi %19, %18 : vector<8x1xi32>
    %c4_i32 = arith.constant 4 : i32
    %21 = vector.broadcast %c4_i32 : i32 to vector<8x1xi32>
    %22 = arith.cmpi slt, %20, %21 : vector<8x1xi32>
    %cst_5 = arith.constant 0.000000e+00 : f32
    %23 = vector.shape_cast %22 : vector<8x1xi1> to vector<8x1xi1>
    %24 = vector.broadcast %23 : vector<8x1xi1> to vector<8x512xi1>
    %25 = vector.broadcast %cst_5 : f32 to vector<8x512xf32>
    %26 = arith.select %24, %16, %25 : vector<8x512xi1>, vector<8x512xf32>
    %cst_6 = arith.constant 0.000000e+00 : f32
    %27 = vector.shape_cast %22 : vector<8x1xi1> to vector<8x1xi1>
    %28 = vector.broadcast %27 : vector<8x1xi1> to vector<8x512xi1>
    %29 = vector.broadcast %cst_6 : f32 to vector<8x512xf32>
    %30 = arith.select %28, %12, %29 : vector<8x512xi1>, vector<8x512xf32>
    %31 = arith.mulf %26, %30 : vector<8x512xf32>
    %32 = arith.addf %6, %31 : vector<8x512xf32>
    %33 = arith.addf %26, %30 : vector<8x512xf32>
    %34 = arith.addf %6, %33 : vector<8x512xf32>
    %c1_i32_7 = arith.constant 1 : i32
    %c0_8 = arith.constant 0 : index
    %c0_9 = arith.constant 0 : index
    %35 = vector.load %arg6[%c0_8, %c0_9] : memref<8x512xf32, #tpu.memory_space<vmem>>, vector<8x512xf32>
    %36 = arith.addf %35, %32 : vector<8x512xf32>
    %c0_10 = arith.constant 0 : index
    %c0_11 = arith.constant 0 : index
    %37 = vector.load %arg6[%c0_10, %c0_11] : memref<8x512xf32, #tpu.memory_space<vmem>>, vector<8x512xf32>
    tpu.vector_store %arg6[%c0_10, %c0_11], %36 {strides = array<i32>} : memref<8x512xf32, #tpu.memory_space<vmem>>, vector<8x512xf32>,
    %c0_12 = arith.constant 0 : index
    %c0_13 = arith.constant 0 : index
    %38 = vector.load %arg7[%c0_12, %c0_13] : memref<8x512xf32, #tpu.memory_space<vmem>>, vector<8x512xf32>
    %39 = arith.addf %38, %34 : vector<8x512xf32>
    %c0_14 = arith.constant 0 : index
    %c0_15 = arith.constant 0 : index
    %40 = vector.load %arg7[%c0_14, %c0_15] : memref<8x512xf32, #tpu.memory_space<vmem>>, vector<8x512xf32>
    tpu.vector_store %arg7[%c0_14, %c0_15], %39 {strides = array<i32>} : memref<8x512xf32, #tpu.memory_space<vmem>>, vector<8x512xf32>,
    %c0_i32_16 = arith.constant 0 : i32
    %41 = arith.cmpi eq, %arg1, %c0_i32_16 : i32
    %42 = arith.extui %41 : i1 to i32
    %c0_i32_17 = arith.constant 0 : i32
    %43 = arith.cmpi ne, %42, %c0_i32_17 : i32
    scf.if %43 {
      %c0_18 = arith.constant 0 : index
      %c0_19 = arith.constant 0 : index
      %44 = vector.load %arg6[%c0_18, %c0_19] : memref<8x512xf32, #tpu.memory_space<vmem>>, vector<8x512xf32>
      %45 = vector.shape_cast %44 : vector<8x512xf32> to vector<1x8x512xf32>
      %cst_20 = arith.constant dense<0.000000e+00> : vector<1xf32>
      %46 = vector.multi_reduction <add>, %45, %cst_20 [1, 2] : vector<1x8x512xf32> to vector<1xf32>
      %47 = vector.shape_cast %46 : vector<1xf32> to vector<1x1x1xf32>
      %48 = vector.extract %47[0, 0, 0] : f32 from vector<1x1x1xf32>
      %49 = vector.broadcast %48 : f32 to vector<1x1x1xf32>
      %c0_21 = arith.constant 0 : index
      %c0_22 = arith.constant 0 : index
      %c0_23 = arith.constant 0 : index
      %50 = vector.load %arg4[%c0_21, %c0_22, %c0_23] : memref<1x1x1xf32, #tpu.memory_space<vmem>>, vector<1x1x1xf32>
      tpu.vector_store %arg4[%c0_21, %c0_22, %c0_23], %49 {strides = array<i32>} : memref<1x1x1xf32, #tpu.memory_space<vmem>>, vector<1x1x1xf32>,
      %c0_24 = arith.constant 0 : index
      %c0_25 = arith.constant 0 : index
      %51 = vector.load %arg7[%c0_24, %c0_25] : memref<8x512xf32, #tpu.memory_space<vmem>>, vector<8x512xf32>
      %52 = vector.shape_cast %51 : vector<8x512xf32> to vector<1x8x512xf32>
      %cst_26 = arith.constant dense<0.000000e+00> : vector<1xf32>
      %53 = vector.multi_reduction <add>, %52, %cst_26 [1, 2] : vector<1x8x512xf32> to vector<1xf32>
      %54 = vector.shape_cast %53 : vector<1xf32> to vector<1x1x1xf32>
      %55 = vector.extract %54[0, 0, 0] : f32 from vector<1x1x1xf32>
      %56 = vector.broadcast %55 : f32 to vector<1x1x1xf32>
      %c0_27 = arith.constant 0 : index
      %c0_28 = arith.constant 0 : index
      %c0_29 = arith.constant 0 : index
      %57 = vector.load %arg5[%c0_27, %c0_28, %c0_29] : memref<1x1x1xf32, #tpu.memory_space<vmem>>, vector<1x1x1xf32>
      tpu.vector_store %arg5[%c0_27, %c0_28, %c0_29], %56 {strides = array<i32>} : memref<1x1x1xf32, #tpu.memory_space<vmem>>, vector<1x1x1xf32>,
    } else {
    }
    return
  }
  func.func @transform_0(%arg0: i32, %arg1: i32) -> (i32, i32) {
    %c1_i32 = arith.constant 1 : i32
    %0 = arith.muli %arg0, %c1_i32 : i32
    %1 = arith.addi %0, %arg1 : i32
    %c0_i32 = arith.constant 0 : i32
    %2 = arith.minsi %1, %c0_i32 : i32
    %c0_i32_0 = arith.constant 0 : i32
    %c0_i32_1 = arith.constant 0 : i32
    return %2, %c0_i32_0 : i32, i32
  }
  func.func @transform_1(%arg0: i32, %arg1: i32) -> (i32, i32) {
    %c1_i32 = arith.constant 1 : i32
    %0 = arith.muli %arg0, %c1_i32 : i32
    %1 = arith.addi %0, %arg1 : i32
    %c0_i32 = arith.constant 0 : i32
    %2 = arith.minsi %1, %c0_i32 : i32
    %c0_i32_0 = arith.constant 0 : i32
    %c0_i32_1 = arith.constant 0 : i32
    return %2, %c0_i32_0 : i32, i32
  }
  func.func @transform_2(%arg0: i32, %arg1: i32) -> (i32, i32, i32) {
    %c0_i32 = arith.constant 0 : i32
    %c0_i32_0 = arith.constant 0 : i32
    %c0_i32_1 = arith.constant 0 : i32
    return %arg0, %c0_i32, %c0_i32_0 : i32, i32, i32
  }
  func.func @transform_3(%arg0: i32, %arg1: i32) -> (i32, i32, i32) {
    %c0_i32 = arith.constant 0 : i32
    %c0_i32_0 = arith.constant 0 : i32
    %c0_i32_1 = arith.constant 0 : i32
    return %arg0, %c0_i32, %c0_i32_0 : i32, i32, i32
  }
}

</mosaic_0001>

<llo_original>
// kernel: tpu_custom_call.1
$region0: #{tpu_custom_call.1}
  #allocation0 [shape = 'u32[]', space=smem, size = 0x4, offset = 0x4, fixed_abs, tag = 'smem constant byte address 0x4 - core index']
  #allocation1 [shape = 'u32[144,128]{1,0:T(1,128)}', space=vmem, size = 0x12000, scoped, tag = 'internal scratch']
  #allocation2 [shape = 'f32[8,512]{1,0:T(8,128)}', space=vmem, size = 0x4000, scoped, tag = 'scratch operand']
  #allocation3 [shape = 'f32[8,512]{1,0:T(8,128)}', space=vmem, size = 0x4000, scoped, tag = 'scratch operand']
  %s0 = inlined_call_operand.hbm [shape: f32[4,512], index: 0, kind: input, shape index: {}]
  %s1 = inlined_call_operand.hbm [shape: f32[4,512], index: 1, kind: input, shape index: {}]
  %s2 = inlined_call_operand.hbm [shape: f32[1,1,1], index: 2, kind: output, shape index: {0}]
  %s3 = inlined_call_operand.hbm [shape: f32[1,1,1], index: 3, kind: output, shape index: {1}]
  %4 = xla_tuple %s2, %s3
  %s5 = sld [smem:[#allocation0]]
  $region42: #{tpu_custom_call.1} parent=0
    _
  %s7 = ssub.s32 1, %s5
  %s8 = scalar_select 0, %s7, %s5
  $region1: #{tpu_custom_call.1} parent=0
    #allocation4 [shape = 'u8[16384]{0}', space=vmem, size = 0x4000, scoped, tag = 'input window, operand 0, single buffered']
    #allocation5 [shape = 's32[1]{0}', space=sflag, size = 0x4, scoped, tag = 'scoped memory for tpu_custom_call.1']
    #allocation6 [shape = 's32[1]{0}', space=sflag, size = 0x4, scoped, tag = 'scoped memory for tpu_custom_call.1']
    #allocation7 [shape = 'u8[16384]{0}', space=vmem, size = 0x4000, scoped, tag = 'input window, operand 1, single buffered']
    #allocation8 [shape = 's32[1]{0}', space=sflag, size = 0x4, scoped, tag = 'scoped memory for tpu_custom_call.1']
    #allocation9 [shape = 'u8[512]{0}', space=vmem, size = 0x400, scoped, tag = 'output window, operand 0, single buffered']
    #allocation10 [shape = 'u8[512]{0}', space=vmem, size = 0x400, scoped, tag = 'output window, operand 1, single buffered']
    #allocation11 [shape = 's32[1]{0}', space=sflag, size = 0x4, scoped, tag = 'scoped memory for tpu_custom_call.1']
    %9 = vsyncpa [#allocation5], 0
    %10 = vsyncpa [#allocation8], 0
    %11 = vsyncpa [#allocation6], 0
    %12 = vsyncpa [#allocation11], 0
    // Predicated region
    $region2: #{tpu_custom_call.1} parent=1 // pred_check
      _
    $region3: #{tpu_custom_call.1} parent=1 // pred_check_branch
      %14 = sbr.rel (0) target = $region5
    $region4: #{tpu_custom_call.1} parent=1 // pred_region
      %s15 = sadd.s32 0, 0
      %p16 = scmp.lt.s32.totalorder %s15, 0
      %s17 = scalar_select %p16, %s15, 0
      %s18 = smul.u32 2, %s17
      %s19 = ssub.s32 1, %s18
      %s20 = smul.u32 64, %s19
      %s21 = smul.u32 %s20, 4
      %s23 = ssub.s32 512, %s21
      %24 = vsyncadd [#allocation5], %s23
      %p25 = scmp.ne.s32.totalorder 0, %s21
      %s26 = smul.addr %s18, 4
      %s27 = smul.addr %s26, 64
      %s28 = scalar_lea.hbm %s0, %s27
      %s29 = smul.u32 16, %s19
      %s30 = sshll.u32 [#allocation4], 4
      %s31 = int_to_ptr.vmem [resolvable:$true] %s30
      %s32 = sshll.u32 %s29, 4
      %36 = dma.hbm_to_vmem [thread:$0]  (%p25), %s28, %s32, %s31, [#allocation5], 256, 256, 16
    $region5: #{tpu_custom_call.1} parent=1 // pred_fallthru
      _
    // Predicated region
    $region6: #{tpu_custom_call.1} parent=1 // pred_check
      _
    $region7: #{tpu_custom_call.1} parent=1 // pred_check_branch
      %38 = sbr.rel (0) target = $region9
    $region8: #{tpu_custom_call.1} parent=1 // pred_region
      %s39 = sadd.s32 0, 0
      %p40 = scmp.lt.s32.totalorder %s39, 0
      %s41 = scalar_select %p40, %s39, 0
      %s42 = smul.u32 2, %s41
      %s43 = ssub.s32 1, %s42
      %s44 = smul.u32 64, %s43
      %s45 = smul.u32 %s44, 4
      %s47 = ssub.s32 512, %s45
      %48 = vsyncadd [#allocation8], %s47
      %p49 = scmp.ne.s32.totalorder 0, %s45
      %s50 = smul.addr %s42, 4
      %s51 = smul.addr %s50, 64
      %s52 = scalar_lea.hbm %s1, %s51
      %s53 = smul.u32 16, %s43
      %s54 = sshll.u32 [#allocation7], 4
      %s55 = int_to_ptr.vmem [resolvable:$true] %s54
      %s56 = sshll.u32 %s53, 4
      %60 = dma.hbm_to_vmem [thread:$0]  (%p49), %s52, %s56, %s55, [#allocation8], 256, 256, 16
    $region9: #{tpu_custom_call.1} parent=1 // pred_fallthru
      _
    // Predicated region
    $region10: #{tpu_custom_call.1} parent=1 // pred_check
      _
    $region11: #{tpu_custom_call.1} parent=1 // pred_check_branch
      %62 = sbr.rel (0) target = $region13
    $region12: #{tpu_custom_call.1} parent=1 // pred_region
      %63 = dma.done [#allocation5], 512
    $region13: #{tpu_custom_call.1} parent=1 // pred_fallthru
      _
    // Predicated region
    $region14: #{tpu_custom_call.1} parent=1 // pred_check
      _
    $region15: #{tpu_custom_call.1} parent=1 // pred_check_branch
      %65 = sbr.rel (0) target = $region17
    $region16: #{tpu_custom_call.1} parent=1 // pred_region
      %66 = dma.done [#allocation8], 512
    $region17: #{tpu_custom_call.1} parent=1 // pred_fallthru
      _
    %s67 = sadd.s32 0, 0
    %p68 = scmp.lt.s32.totalorder %s67, 0
    %s69 = scalar_select %p68, %s67, 0
    %s70 = smul.u32 2, %s69
    %s71 = ssub.s32 1, %s70
    %s72 = smul.u32 64, %s71
    %s73 = smul.u32 %s72, 4
    %s74 = sadd.s32 0, 0
    %p75 = scmp.lt.s32.totalorder %s74, 0
    %s76 = scalar_select %p75, %s74, 0
    %s77 = smul.u32 2, %s76
    %s78 = ssub.s32 1, %s77
    %s79 = smul.u32 64, %s78
    %s80 = smul.u32 %s79, 4
    %p81 = scmp.eq.s32.totalorder 0, 0
    // Predicated region
    $region18: #{tpu_custom_call.1} parent=1 // pred_check
      %p82 = pneg %p81
    $region19: #{tpu_custom_call.1} parent=1 // pred_check_branch
      %84 = sbr.rel (%p82) target = $region21
    $region20: #{tpu_custom_call.1} parent=1 // pred_region
      %85 = vst [vmem:[#allocation2] sm:$0xff] 0.0
      %86 = vst [vmem:[#allocation2 + $0x8] sm:$0xff] 0.0
      %87 = vst [vmem:[#allocation2 + $0x10] sm:$0xff] 0.0
      %88 = vst [vmem:[#allocation2 + $0x18] sm:$0xff] 0.0
      %89 = vst [vmem:[#allocation3] sm:$0xff] 0.0
      %90 = vst [vmem:[#allocation3 + $0x8] sm:$0xff] 0.0
      %91 = vst [vmem:[#allocation3 + $0x10] sm:$0xff] 0.0
      %92 = vst [vmem:[#allocation3 + $0x18] sm:$0xff] 0.0
    $region21: #{tpu_custom_call.1} parent=1 // pred_fallthru
      _
    %s93 = sadd.s32 0, 0
    %s94 = smul.u32 %s93, 8
    %s95 = smul.u32 0, 4
    %s96 = smul.addr %s95, 4
    %s97 = scalar_lea.vmem [#allocation4], %s96
    %v98 = vld [vmem:[%s97] sm:$0xff]
    %v99 = vld [vmem:[%s97 + $0x8] sm:$0xff]
    %v100 = vld [vmem:[%s97 + $0x10] sm:$0xff]
    %v101 = vld [vmem:[%s97 + $0x18] sm:$0xff]
    %s102 = smul.addr %s95, 4
    %s103 = scalar_lea.vmem [#allocation7], %s102
    %v104 = vld [vmem:[%s103] sm:$0xff]
    %v105 = vld [vmem:[%s103 + $0x8] sm:$0xff]
    %v106 = vld [vmem:[%s103 + $0x10] sm:$0xff]
    %v107 = vld [vmem:[%s103 + $0x18] sm:$0xff]
    %vm108 = vcmp.gt.f32.partialorder %v98, 0.5
    %vm109 = vcmp.gt.f32.partialorder %v99, 0.5
    %vm110 = vcmp.gt.f32.partialorder %v100, 0.5
    %vm111 = vcmp.gt.f32.partialorder %v101, 0.5
    %v112 = vsel %vm108, 1, 0
    %v113 = vsel %vm109, 1, 0
    %v114 = vsel %vm110, 1, 0
    %v115 = vsel %vm111, 1, 0
    %v116 = vcvt.s32.f32 %v112
    %v117 = vcvt.s32.f32 %v113
    %v118 = vcvt.s32.f32 %v114
    %v119 = vcvt.s32.f32 %v115
    %s120 = sadd.s32 %s94, 0
    %v121 = vlaneseq
    %v122 = vshrl.u32 %v121, 7
    %v123 = vstv %s120
    %v124 = vadd.s32 %v123, %v122
    %vm125 = vcmp.lt.s32.totalorder %v124, 4
    %v126 = vsel %vm125, 1, 0
    %vm127 = vcmp.eq.s32.totalorder %v126, 1
    %v132 = vcombine.low %v116, %v118
    %v133 = vcombine.high %v116, %v118
    %v134 = vcombine.low %v117, %v119
    %v135 = vcombine.high %v117, %v119
    %v140 = vsel %vm127, %v132, 0.0
    %v141 = vsel %vm127, %v133, 0.0
    %v142 = vsel %vm127, %v134, 0.0
    %v143 = vsel %vm127, %v135, 0.0
    %v148 = vcombine.low %v104, %v106
    %v149 = vcombine.high %v104, %v106
    %v150 = vcombine.low %v105, %v107
    %v151 = vcombine.high %v105, %v107
    %v156 = vsel %vm127, %v148, 0.0
    %v157 = vsel %vm127, %v149, 0.0
    %v158 = vsel %vm127, %v150, 0.0
    %v159 = vsel %vm127, %v151, 0.0
    %v160 = vmul.f32 %v140, %v156
    %v161 = vmul.f32 %v141, %v157
    %v162 = vmul.f32 %v142, %v158
    %v163 = vmul.f32 %v143, %v159
    %v164 = vadd.f32 %v160, 0.0
    %v165 = vadd.f32 %v161, 0.0
    %v166 = vadd.f32 %v162, 0.0
    %v167 = vadd.f32 %v163, 0.0
    %v168 = vadd.f32 %v140, %v156
    %v169 = vadd.f32 %v141, %v157
    %v170 = vadd.f32 %v142, %v158
    %v171 = vadd.f32 %v143, %v159
    %v172 = vadd.f32 %v168, 0.0
    %v173 = vadd.f32 %v169, 0.0
    %v174 = vadd.f32 %v170, 0.0
    %v175 = vadd.f32 %v171, 0.0
    %v176 = vld [vmem:[#allocation2] sm:$0xff]
    %v177 = vld [vmem:[#allocation2 + $0x8] sm:$0xff]
    %v178 = vld [vmem:[#allocation2 + $0x10] sm:$0xff]
    %v179 = vld [vmem:[#allocation2 + $0x18] sm:$0xff]
    %v180 = vadd.f32 %v176, %v164
    %v181 = vadd.f32 %v177, %v165
    %v182 = vadd.f32 %v178, %v166
    %v183 = vadd.f32 %v179, %v167
    %184 = vst [vmem:[#allocation2] sm:$0xff] %v180
    %185 = vst [vmem:[#allocation2 + $0x8] sm:$0xff] %v181
    %186 = vst [vmem:[#allocation2 + $0x10] sm:$0xff] %v182
    %187 = vst [vmem:[#allocation2 + $0x18] sm:$0xff] %v183
    %v188 = vld [vmem:[#allocation3] sm:$0xff]
    %v189 = vld [vmem:[#allocation3 + $0x8] sm:$0xff]
    %v190 = vld [vmem:[#allocation3 + $0x10] sm:$0xff]
    %v191 = vld [vmem:[#allocation3 + $0x18] sm:$0xff]
    %v192 = vadd.f32 %v188, %v172
    %v193 = vadd.f32 %v189, %v173
    %v194 = vadd.f32 %v190, %v174
    %v195 = vadd.f32 %v191, %v175
    %196 = vst [vmem:[#allocation3] sm:$0xff] %v192
    %197 = vst [vmem:[#allocation3 + $0x8] sm:$0xff] %v193
    %198 = vst [vmem:[#allocation3 + $0x10] sm:$0xff] %v194
    %199 = vst [vmem:[#allocation3 + $0x18] sm:$0xff] %v195
    // Predicated region
    $region22: #{tpu_custom_call.1} parent=1 // pred_check
      %p200 = pneg %p81
    $region23: #{tpu_custom_call.1} parent=1 // pred_check_branch
      %202 = sbr.rel (%p200) target = $region25
    $region24: #{tpu_custom_call.1} parent=1 // pred_region
      %v203 = vld [vmem:[#allocation2] sm:$0xff]
      %v204 = vld [vmem:[#allocation2 + $0x8] sm:$0xff]
      %v205 = vld [vmem:[#allocation2 + $0x10] sm:$0xff]
      %v206 = vld [vmem:[#allocation2 + $0x18] sm:$0xff]
      %v207 = vadd.f32 %v203, %v204
      %v208 = vadd.f32 %v207, %v205
      %v209 = vadd.f32 %v208, %v206
      %210 = vadd.xlane.f32.xlu0 %v209
      %v211 = vpop.xlane.xlu0 %210
      %v212 = vrot.slane %v211, 4
      %v213 = vadd.f32 %v211, %v212
      %v214 = vrot.slane %v213, 2
      %v215 = vadd.f32 %v213, %v214
      %v216 = vrot.slane %v215, 1
      %v217 = vadd.f32 %v215, %v216
      %s218 = vtos %v217
      %v219 = vstv %s218
      %vm220 = vcmask 0
      %221 = vst.msk [vmem:[#allocation9] sm:$0x1] %vm220, %v219
      %v222 = vld [vmem:[#allocation3] sm:$0xff]
      %v223 = vld [vmem:[#allocation3 + $0x8] sm:$0xff]
      %v224 = vld [vmem:[#allocation3 + $0x10] sm:$0xff]
      %v225 = vld [vmem:[#allocation3 + $0x18] sm:$0xff]
      %v226 = vadd.f32 %v222, %v223
      %v227 = vadd.f32 %v226, %v224
      %v228 = vadd.f32 %v227, %v225
      %229 = vadd.xlane.f32.xlu0 %v228
      %v230 = vpop.xlane.xlu0 %229
      %v231 = vrot.slane %v230, 4
      %v232 = vadd.f32 %v230, %v231
      %v233 = vrot.slane %v232, 2
      %v234 = vadd.f32 %v232, %v233
      %v235 = vrot.slane %v234, 1
      %v236 = vadd.f32 %v234, %v235
      %s237 = vtos %v236
      %v238 = vstv %s237
      %239 = vst.msk [vmem:[#allocation10] sm:$0x1] %vm220, %v238
    $region25: #{tpu_custom_call.1} parent=1 // pred_fallthru
      _
    // Predicated region
    $region26: #{tpu_custom_call.1} parent=1 // pred_check
      _
    $region27: #{tpu_custom_call.1} parent=1 // pred_check_branch
      %241 = sbr.rel (0) target = $region29
    $region28: #{tpu_custom_call.1} parent=1 // pred_region
      %s243 = ssub.s32 16, 16
      %244 = vsyncadd [#allocation6], %s243
      %s246 = sshll.u32 [#allocation9], 4
      %s247 = int_to_ptr.vmem [resolvable:$true] %s246
      %249 = dma.vmem_to_hbm [thread:$0]  %s247, 16, %s2, [#allocation6]
    $region29: #{tpu_custom_call.1} parent=1 // pred_fallthru
      _
    // Predicated region
    $region30: #{tpu_custom_call.1} parent=1 // pred_check
      _
    $region31: #{tpu_custom_call.1} parent=1 // pred_check_branch
      %251 = sbr.rel (0) target = $region33
    $region32: #{tpu_custom_call.1} parent=1 // pred_region
      %s253 = ssub.s32 16, 16
      %254 = vsyncadd [#allocation11], %s253
      %s256 = sshll.u32 [#allocation10], 4
      %s257 = int_to_ptr.vmem [resolvable:$true] %s256
      %259 = dma.vmem_to_hbm [thread:$0]  %s257, 16, %s3, [#allocation11]
    $region33: #{tpu_custom_call.1} parent=1 // pred_fallthru
      _
    // Predicated region
    $region34: #{tpu_custom_call.1} parent=1 // pred_check
      _
    $region35: #{tpu_custom_call.1} parent=1 // pred_check_branch
      %261 = sbr.rel (0) target = $region37
    $region36: #{tpu_custom_call.1} parent=1 // pred_region
      %262 = dma.done [#allocation6], 16
    $region37: #{tpu_custom_call.1} parent=1 // pred_fallthru
      _
    // Predicated region
    $region38: #{tpu_custom_call.1} parent=1 // pred_check
      _
    $region39: #{tpu_custom_call.1} parent=1 // pred_check_branch
      %264 = sbr.rel (0) target = $region41
    $region40: #{tpu_custom_call.1} parent=1 // pred_region
      %265 = dma.done [#allocation11], 16
    $region41: #{tpu_custom_call.1} parent=1 // pred_fallthru
      _
    %266 = vsyncpa [#allocation5], 1
    %267 = vsyncpa [#allocation8], 1
    %268 = vsyncpa [#allocation6], 1
    %269 = vsyncpa [#allocation11], 1

</llo_original>
